<compile_context>
chip_gen: v7x
topology: tpu7x:2x2x1
jax: 0.10.0
libtpu: 0.0.40
codegen_flags: <defaults>
</compile_context>

<pallas_src>
import functools

import jax
import jax.numpy as jnp
from jax.experimental import pallas as pl
from jax.experimental.pallas import tpu as pltpu


def _round_up(x, m):
    return ((x + m - 1) // m) * m


def conv_block_kernel(x_ref, w_ref, b_ref, o_ref, xpad_ref, *,
                      H, W, Cin, Cout, Kpad, alpha):
    """One image per grid step.

    x_ref    : (1, H, W*Cin)      lane-dense, UNPADDED input rows
    w_ref    : (3, Kpad, W*Cout)  banded per-kh weights (resident across steps)
    b_ref    : (1, W*Cout)        bias tiled across W
    o_ref    : (1, H, W*Cout)     lane-dense output
    xpad_ref : (H+2, Kpad)        VMEM scratch (halo rows + lane pad, zeroed)
    """
    K = W * Cin
    # One zero-fill provides the top/bottom halo rows (padding=1 along H) and the
    # zero lane-padding K -> Kpad; no HBM pad pass in the wrapper.
    xpad_ref[...] = jnp.zeros_like(xpad_ref)
    xpad_ref[1:H + 1, :K] = x_ref[0]

    # Three lane-dense banded matmuls (one per kernel row kh), f32 accumulation.
    # The kw taps and the W-direction zero padding are folded into the band, so
    # no in-kernel im2col / reshape / concat is needed and the result is already
    # in the (H, W*Cout) output layout.
    acc = jnp.dot(xpad_ref[0:H, :], w_ref[0], preferred_element_type=jnp.float32)
    acc = acc + jnp.dot(xpad_ref[1:H + 1, :], w_ref[1],
                        preferred_element_type=jnp.float32)
    acc = acc + jnp.dot(xpad_ref[2:H + 2, :], w_ref[2],
                        preferred_element_type=jnp.float32)

    acc = acc + b_ref[...].astype(jnp.float32)      # bias, broadcast over H rows
    out = jnp.maximum(acc, alpha * acc)             # LeakyReLU(alpha), alpha < 1
    o_ref[0] = out.astype(o_ref.dtype)


def conv_block(x_nchw, w_oihw, bias, *, alpha=0.2):
    """ConvBlock forward.  x_nchw: (N, Cin, H, W); w_oihw: (Cout, Cin, 3, 3)."""
    N, Cin, H, W = x_nchw.shape
    Cout = w_oihw.shape[0]
    K = W * Cin
    Kpad = _round_up(K, 128)          # unmasked vector loads on the contraction dim
    Nout = W * Cout                   # lane-dense output width (128 in the example)

    # NCHW -> (N, H, W*Cin).  The transpose is the only extra HBM pass the NCHW
    # API forces; the fold of (W, Cin) into one lane axis is a free reshape.
    x_flat = jnp.transpose(x_nchw, (0, 2, 3, 1)).reshape(N, H, K)

    # Banded weights: band[kh, wi*Cin+ci, wo*Cout+co] = w[co, ci, kh, wi-wo+1]
    # when wi-wo+1 in {0,1,2}, else 0 (out-of-range == zero padding along W).
    w_out = jnp.arange(W)
    w_in = jnp.arange(W)
    shifts = jnp.stack(
        [(w_in[:, None] == (w_out[None, :] + kw - 1)).astype(w_oihw.dtype)
         for kw in range(3)], axis=0)                    # (3, W, W)
    w_t = jnp.transpose(w_oihw, (2, 3, 1, 0))            # (kh, kw, Cin, Cout)
    band = jnp.einsum('xvw,hxio->hviwo', shifts, w_t)    # (3, W, Cin, W, Cout)
    band = band.reshape(3, K, Nout)
    band = jnp.pad(band, ((0, 0), (0, Kpad - K), (0, 0)))  # zero rows for K->Kpad

    # Bias tiled to the lane-dense output layout (index = wo*Cout + co).
    b_flat = jnp.tile(bias, (W,)).reshape(1, Nout)

    kernel = functools.partial(conv_block_kernel, H=H, W=W, Cin=Cin, Cout=Cout,
                               Kpad=Kpad, alpha=alpha)

    # VMEM budget: double-buffered blocks + resident band/bias + scratch + 2 MiB
    # headroom, clamped to 7/8 of this chip's VMEM (no hard-coded 64 MiB clamp).
    xi = jnp.dtype(x_nchw.dtype).itemsize
    wi_sz = jnp.dtype(w_oihw.dtype).itemsize
    needed = (2 * (H * K * xi + H * Nout * xi + 3 * Kpad * Nout * wi_sz
                   + Nout * wi_sz)
              + (H + 2) * Kpad * xi + (2 << 20))
    try:
        vmem_cap = pltpu.get_tpu_info().vmem_capacity_bytes
    except Exception:
        vmem_cap = 64 << 20
    vmem_budget = int(min(max(needed, 16 << 20), (vmem_cap * 7) // 8))

    out_flat = pl.pallas_call(
        kernel,
        out_shape=jax.ShapeDtypeStruct((N, H, Nout), x_nchw.dtype),
        grid=(N,),
        in_specs=[
            pl.BlockSpec((1, H, K), lambda n: (n, 0, 0)),          # per-image rows
            pl.BlockSpec((3, Kpad, Nout), lambda n: (0, 0, 0)),    # resident band
            pl.BlockSpec((1, Nout), lambda n: (0, 0)),             # resident bias
        ],
        out_specs=pl.BlockSpec((1, H, Nout), lambda n: (n, 0, 0)),
        scratch_shapes=[pltpu.VMEM((H + 2, Kpad), x_nchw.dtype)],
        compiler_params=pltpu.CompilerParams(
            dimension_semantics=("parallel",),
            vmem_limit_bytes=vmem_budget),
    )(x_flat, band, b_flat)

    # Unfold lanes back to channels and return NCHW to match torch semantics.
    out_nhwc = out_flat.reshape(N, H, W, Cout)
    return jnp.transpose(out_nhwc, (0, 3, 1, 2))


def conv_block_ref(x_nchw, w_oihw, bias, *, alpha=0.2):
    """Pure-JAX reference (XLA conv) for correctness checking."""
    y = jax.lax.conv_general_dilated(
        x_nchw, w_oihw, window_strides=(1, 1), padding=((1, 1), (1, 1)),
        dimension_numbers=("NCHW", "OIHW", "NCHW"))
    y = y + bias.reshape(1, -1, 1, 1)
    return jnp.where(y >= 0.0, y, alpha * y)


if __name__ == "__main__":
    # Small shapes consistent with ConvBlock(ndims=2, in_channels=4, out_channels=8)
    N, Cin, Cout, H, W = 2, 4, 8, 16, 16

    key = jax.random.PRNGKey(0)
    kx, kw, kb = jax.random.split(key, 3)
    x = jax.random.normal(kx, (N, Cin, H, W), dtype=jnp.float32)
    # Deterministic synthetic parameters (shapes from nn.Conv2d(4, 8, 3, 1, 1))
    w = 0.1 * jax.random.normal(kw, (Cout, Cin, 3, 3), dtype=jnp.float32)
    b = 0.1 * jax.random.normal(kb, (Cout,), dtype=jnp.float32)

    out = conv_block(x, w, b)
    out = jax.block_until_ready(out)

    ref = conv_block_ref(x, w, b)
    assert out.shape == (N, Cout, H, W)
    assert jnp.allclose(out, ref, atol=1e-4, rtol=1e-4)

    print("KERNEL_OK")
</pallas_src>

<mosaic_0001>
module attributes {stable_mosaic.version = 11 : i64} {
  func.func @conv_block_kernel(%arg0: i32, %arg1: memref<1x16x64xf32, #tpu.memory_space<vmem>>, %arg2: memref<3x128x128xf32, #tpu.memory_space<vmem>>, %arg3: memref<1x128xf32, #tpu.memory_space<vmem>>, %arg4: memref<1x16x128xf32, #tpu.memory_space<vmem>>, %arg5: memref<18x128xf32, #tpu.memory_space<vmem>>) attributes {dimension_semantics = [#tpu.dimension_semantics<parallel>], iteration_bounds = array<i64: 2>, scalar_prefetch = 0 : i64, scratch_operands = 1 : i64, tpu.core_type = #tpu.core_type<tc>, window_params = [{transform_indices = @transform_0, window_bounds = array<i64: 1, 16, 64>}, {pipeline_mode = #tpu.pipeline_mode<synchronous>, transform_indices = @transform_1, window_bounds = array<i64: 3, 128, 128>}, {pipeline_mode = #tpu.pipeline_mode<synchronous>, transform_indices = @transform_2, window_bounds = array<i64: 1, 128>}, {transform_indices = @transform_3, window_bounds = array<i64: 1, 16, 128>}]} {
    %cst = arith.constant 0.000000e+00 : f32
    %0 = vector.broadcast %cst : f32 to vector<18x128xf32>
    %c0 = arith.constant 0 : index
    %c0_0 = arith.constant 0 : index
    %1 = vector.load %arg5[%c0, %c0_0] : memref<18x128xf32, #tpu.memory_space<vmem>>, vector<18x128xf32>
    tpu.vector_store %arg5[%c0, %c0_0], %0 {strides = array<i32>} : memref<18x128xf32, #tpu.memory_space<vmem>>, vector<18x128xf32>,
    %c0_1 = arith.constant 0 : index
    %c0_2 = arith.constant 0 : index
    %c0_3 = arith.constant 0 : index
    %2 = vector.load %arg1[%c0_1, %c0_2, %c0_3] : memref<1x16x64xf32, #tpu.memory_space<vmem>>, vector<1x16x64xf32>
    %3 = vector.shape_cast %2 : vector<1x16x64xf32> to vector<16x64xf32>
    %c1 = arith.constant 1 : index
    %c0_4 = arith.constant 0 : index
    %4 = vector.load %arg5[%c1, %c0_4] : memref<18x128xf32, #tpu.memory_space<vmem>>, vector<16x64xf32>
    tpu.vector_store %arg5[%c1, %c0_4], %3 {strides = array<i32>} : memref<18x128xf32, #tpu.memory_space<vmem>>, vector<16x64xf32>,
    %c0_5 = arith.constant 0 : index
    %c0_6 = arith.constant 0 : index
    %5 = vector.load %arg5[%c0_5, %c0_6] : memref<18x128xf32, #tpu.memory_space<vmem>>, vector<16x128xf32>
    %c0_7 = arith.constant 0 : index
    %c0_8 = arith.constant 0 : index
    %c0_9 = arith.constant 0 : index
    %6 = vector.load %arg2[%c0_7, %c0_8, %c0_9] : memref<3x128x128xf32, #tpu.memory_space<vmem>>, vector<1x128x128xf32>
    %7 = vector.shape_cast %6 : vector<1x128x128xf32> to vector<128x128xf32>
    %cst_10 = arith.constant dense<0.000000e+00> : vector<16x128xf32>
    %8 = tpu.matmul %5, %7, %cst_10 {dimension_numbers = #tpu.dot_dimension_numbers<[1], [0], [0], [1], [0, 0, 1, 1], [], []>} : vector<16x128xf32>, vector<128x128xf32>, vector<16x128xf32> -> vector<16x128xf32>
    %c1_11 = arith.constant 1 : index
    %c0_12 = arith.constant 0 : index
    %9 = vector.load %arg5[%c1_11, %c0_12] : memref<18x128xf32, #tpu.memory_space<vmem>>, vector<16x128xf32>
    %c1_13 = arith.constant 1 : index
    %c0_14 = arith.constant 0 : index
    %c0_15 = arith.constant 0 : index
    %10 = vector.load %arg2[%c1_13, %c0_14, %c0_15] : memref<3x128x128xf32, #tpu.memory_space<vmem>>, vector<1x128x128xf32>
    %11 = vector.shape_cast %10 : vector<1x128x128xf32> to vector<128x128xf32>
    %cst_16 = arith.constant dense<0.000000e+00> : vector<16x128xf32>
    %12 = tpu.matmul %9, %11, %cst_16 {dimension_numbers = #tpu.dot_dimension_numbers<[1], [0], [0], [1], [0, 0, 1, 1], [], []>} : vector<16x128xf32>, vector<128x128xf32>, vector<16x128xf32> -> vector<16x128xf32>
    %13 = arith.addf %8, %12 : vector<16x128xf32>
    %c2 = arith.constant 2 : index
    %c0_17 = arith.constant 0 : index
    %14 = vector.load %arg5[%c2, %c0_17] : memref<18x128xf32, #tpu.memory_space<vmem>>, vector<16x128xf32>
    %c2_18 = arith.constant 2 : index
    %c0_19 = arith.constant 0 : index
    %c0_20 = arith.constant 0 : index
    %15 = vector.load %arg2[%c2_18, %c0_19, %c0_20] : memref<3x128x128xf32, #tpu.memory_space<vmem>>, vector<1x128x128xf32>
    %16 = vector.shape_cast %15 : vector<1x128x128xf32> to vector<128x128xf32>
    %cst_21 = arith.constant dense<0.000000e+00> : vector<16x128xf32>
    %17 = tpu.matmul %14, %16, %cst_21 {dimension_numbers = #tpu.dot_dimension_numbers<[1], [0], [0], [1], [0, 0, 1, 1], [], []>} : vector<16x128xf32>, vector<128x128xf32>, vector<16x128xf32> -> vector<16x128xf32>
    %18 = arith.addf %13, %17 : vector<16x128xf32>
    %c0_22 = arith.constant 0 : index
    %c0_23 = arith.constant 0 : index
    %19 = vector.load %arg3[%c0_22, %c0_23] : memref<1x128xf32, #tpu.memory_space<vmem>>, vector<1x128xf32>
    %20 = vector.broadcast %19 : vector<1x128xf32> to vector<16x128xf32>
    %21 = arith.addf %18, %20 : vector<16x128xf32>
    %cst_24 = arith.constant 2.000000e-01 : f32
    %22 = vector.broadcast %cst_24 : f32 to vector<16x128xf32>
    %23 = arith.mulf %22, %21 : vector<16x128xf32>
    %24 = arith.maximumf %21, %23 : vector<16x128xf32>
    %c0_25 = arith.constant 0 : index
    %c0_26 = arith.constant 0 : index
    %c0_27 = arith.constant 0 : index
    %25 = vector.load %arg4[%c0_25, %c0_26, %c0_27] : memref<1x16x128xf32, #tpu.memory_space<vmem>>, vector<1x16x128xf32>
    %26 = vector.shape_cast %25 : vector<1x16x128xf32> to vector<16x128xf32>
    %27 = vector.shape_cast %24 : vector<16x128xf32> to vector<1x16x128xf32>
    tpu.vector_store %arg4[%c0_25, %c0_26, %c0_27], %27 {strides = array<i32>} : memref<1x16x128xf32, #tpu.memory_space<vmem>>, vector<1x16x128xf32>,
    return
  }
  func.func @transform_0(%arg0: i32) -> (i32, i32, i32) {
    %c0_i32 = arith.constant 0 : i32
    %c0_i32_0 = arith.constant 0 : i32
    %c0_i32_1 = arith.constant 0 : i32
    return %arg0, %c0_i32, %c0_i32_0 : i32, i32, i32
  }
  func.func @transform_1(%arg0: i32) -> (i32, i32, i32) {
    %c0_i32 = arith.constant 0 : i32
    %c0_i32_0 = arith.constant 0 : i32
    %c0_i32_1 = arith.constant 0 : i32
    %c0_i32_2 = arith.constant 0 : i32
    return %c0_i32, %c0_i32_0, %c0_i32_1 : i32, i32, i32
  }
  func.func @transform_2(%arg0: i32) -> (i32, i32) {
    %c0_i32 = arith.constant 0 : i32
    %c0_i32_0 = arith.constant 0 : i32
    %c0_i32_1 = arith.constant 0 : i32
    return %c0_i32, %c0_i32_0 : i32, i32
  }
  func.func @transform_3(%arg0: i32) -> (i32, i32, i32) {
    %c0_i32 = arith.constant 0 : i32
    %c0_i32_0 = arith.constant 0 : i32
    %c0_i32_1 = arith.constant 0 : i32
    return %arg0, %c0_i32, %c0_i32_0 : i32, i32, i32
  }
}

</mosaic_0001>

<llo_original>
// kernel: tpu_custom_call.1
$region0: #{tpu_custom_call.1}
  #allocation0 [shape = 'u32[]', space=smem, size = 0x4, offset = 0x4, fixed_abs, tag = 'smem constant byte address 0x4 - core index']
  #allocation1 [shape = 'u32[144,128]{1,0:T(1,128)}', space=vmem, size = 0x12000, scoped, tag = 'internal scratch']
  #allocation2 [shape = 'f32[18,128]{1,0:T(8,128)}', space=vmem, size = 0x3000, scoped, tag = 'scratch operand']
  %s0 = inlined_call_operand.hbm [shape: f32[2,16,64], index: 0, kind: input, shape index: {}]
  %s1 = inlined_call_operand.hbm [shape: f32[3,128,128], index: 1, kind: input, shape index: {}]
  %s2 = inlined_call_operand.vmem [shape: f32[1,128], index: 2, kind: input, shape index: {}]
  %s3 = inlined_call_operand.hbm [shape: f32[2,16,128], index: 3, kind: output, shape index: {}]
  %s4 = sld [smem:[#allocation0]]
  $region53: #{tpu_custom_call.1} parent=0
    _
  %s6 = ssub.s32 1, %s4
  %s7 = scalar_select 0, %s6, %s4
  $region1: #{tpu_custom_call.1} parent=0
    #allocation3 [shape = 'u8[16384]{0}', space=vmem, size = 0x4000, scoped, tag = 'input window, operand 0']
    #allocation4 [shape = 's32[2]{0}', space=sflag, size = 0x8, scoped, tag = 'scoped memory for tpu_custom_call.1']
    #allocation5 [shape = 's32[2]{0}', space=sflag, size = 0x8, scoped, tag = 'scoped memory for tpu_custom_call.1']
    #allocation6 [shape = 'u8[196608]{0}', space=vmem, size = 0x30000, scoped, tag = 'input window, operand 1, single buffered']
    #allocation7 [shape = 's32[1]{0}', space=sflag, size = 0x4, scoped, tag = 'scoped memory for tpu_custom_call.1']
    #allocation8 [shape = 'u8[16384]{0}', space=vmem, size = 0x4000, scoped, tag = 'output window, operand 0']
    %8 = vsyncpa [#allocation4], 0
    %s9 = scalar_lea.sflag [#allocation4], 1
    %10 = vsyncpa %s9, 0
    %11 = vsyncpa [#allocation7], 0
    %12 = vsyncpa [#allocation5], 0
    %s13 = scalar_lea.sflag [#allocation5], 1
    %14 = vsyncpa %s13, 0
    loop: start=0, step=1, limit=4
    $region2: #{tpu_custom_call.1} parent=1 // loop_pre_header
      _
    $region3: #{tpu_custom_call.1} parent=1 // loop_header
      %s16 = sphi 0, %s20
      %p17 = scmp.ge.s32.totalorder %s16, 4
      %s26 = sphi 0, %s28
      %s29 = sphi 0, %s26
      %s30 = sphi 0, %s29
      %s46 = sphi 0, %s30
      %s50 = sphi 0, %s50
      %s52 = sphi 0, %s50
      %s53 = sphi 0, %s52
      %s67 = sphi 0, %s53
      %s71 = sphi 0, %s71
      %s73 = sphi 0, %s71
      %s74 = sphi 0, %s73
      %s88 = sphi 0, %s74
      %s94 = sphi 0, %s96
      %s97 = sphi 0, %s94
      %s98 = sphi 0, %s97
      %s114 = sphi 0, %s98
    $region4: #{tpu_custom_call.1} parent=1 // loop_header_branch
      %19 = sbr.rel (%p17) target = $region8
    $region5: #{tpu_custom_call.1} parent=1 // loop_body
      %s21 = ssub.s32 %s16, 1
      %s22 = ssub.s32 %s16, 2
      %s23 = sadd.s32 %s16, 1
      %s24 = ssub.s32 %s16, %s23
      %p25 = scmp.eq.s32.totalorder %s24, 0
      %s27 = sadd.s32 %s26, 1
      %s28 = scalar_select %p25, %s26, %s27
      %p31 = pneg %p25
      %p32 = scmp.eq.s32.totalorder %s16, 1
      %p33 = por %p31, %p32
      %p34 = scmp.ne.s32.totalorder %s26, %s29
      %p35 = scmp.eq.s32.totalorder %s16, 0
      %p36 = por %p34, %p35
      %p37 = scmp.ne.s32.totalorder %s26, %s29
      %p38 = scmp.eq.s32.totalorder %s21, 1
      %p39 = por %p37, %p38
      %p40 = scmp.ne.s32.totalorder %s29, %s30
      %p41 = scmp.eq.s32.totalorder %s21, 0
      %p42 = por %p40, %p41
      %p43 = scmp.ne.s32.totalorder %s29, %s30
      %p44 = scmp.eq.s32.totalorder %s22, 1
      %p45 = por %p43, %p44
      %p47 = scmp.ne.s32.totalorder %s30, %s46
      %p48 = scmp.eq.s32.totalorder %s22, 0
      %p49 = por %p47, %p48
      %s51 = sadd.s32 %s50, 1
      %p54 = scmp.eq.s32.totalorder %s16, 1
      %p55 = scmp.ne.s32.totalorder %s50, %s52
      %p56 = scmp.eq.s32.totalorder %s16, 0
      %p57 = por %p55, %p56
      %p58 = scmp.ne.s32.totalorder %s50, %s52
      %p59 = scmp.eq.s32.totalorder %s21, 1
      %p60 = por %p58, %p59
      %p61 = scmp.ne.s32.totalorder %s52, %s53
      %p62 = scmp.eq.s32.totalorder %s21, 0
      %p63 = por %p61, %p62
      %p64 = scmp.ne.s32.totalorder %s52, %s53
      %p65 = scmp.eq.s32.totalorder %s22, 1
      %p66 = por %p64, %p65
      %p68 = scmp.ne.s32.totalorder %s53, %s67
      %p69 = scmp.eq.s32.totalorder %s22, 0
      %p70 = por %p68, %p69
      %s72 = sadd.s32 %s71, 1
      %p75 = scmp.eq.s32.totalorder %s16, 1
      %p76 = scmp.ne.s32.totalorder %s71, %s73
      %p77 = scmp.eq.s32.totalorder %s16, 0
      %p78 = por %p76, %p77
      %p79 = scmp.ne.s32.totalorder %s71, %s73
      %p80 = scmp.eq.s32.totalorder %s21, 1
      %p81 = por %p79, %p80
      %p82 = scmp.ne.s32.totalorder %s73, %s74
      %p83 = scmp.eq.s32.totalorder %s21, 0
      %p84 = por %p82, %p83
      %p85 = scmp.ne.s32.totalorder %s73, %s74
      %p86 = scmp.eq.s32.totalorder %s22, 1
      %p87 = por %p85, %p86
      %p89 = scmp.ne.s32.totalorder %s74, %s88
      %p90 = scmp.eq.s32.totalorder %s22, 0
      %p91 = por %p89, %p90
      %s92 = ssub.s32 %s16, %s23
      %p93 = scmp.eq.s32.totalorder %s92, 0
      %s95 = sadd.s32 %s94, 1
      %s96 = scalar_select %p93, %s94, %s95
      %p99 = pneg %p93
      %p100 = scmp.eq.s32.totalorder %s16, 1
      %p101 = por %p99, %p100
      %p102 = scmp.ne.s32.totalorder %s94, %s97
      %p103 = scmp.eq.s32.totalorder %s16, 0
      %p104 = por %p102, %p103
      %p105 = scmp.ne.s32.totalorder %s94, %s97
      %p106 = scmp.eq.s32.totalorder %s21, 1
      %p107 = por %p105, %p106
      %p108 = scmp.ne.s32.totalorder %s97, %s98
      %p109 = scmp.eq.s32.totalorder %s21, 0
      %p110 = por %p108, %p109
      %p111 = scmp.ne.s32.totalorder %s97, %s98
      %p112 = scmp.eq.s32.totalorder %s22, 1
      %p113 = por %p111, %p112
      %p115 = scmp.ne.s32.totalorder %s98, %s114
      %p116 = scmp.eq.s32.totalorder %s22, 0
      %p117 = por %p115, %p116
      %p118 = scmp.le.s32.totalorder 1, %s16
      %p119 = scmp.lt.s32.totalorder %s16, 3
      %p120 = pnand %p118, %p119
      %p121 = pneg %p120
      // Predicated region
      $region9: #{tpu_custom_call.1} parent=5 // pred_check
        _
      $region10: #{tpu_custom_call.1} parent=5 // pred_check_branch
        %123 = sbr.rel (%p120) target = $region12
      $region11: #{tpu_custom_call.1} parent=5 // pred_region
        %s124 = ssub.s32 %s16, 1
        // Predicated region
        $region13: #{tpu_custom_call.1} parent=11 // pred_check
          %p125 = pneg %p63
        $region14: #{tpu_custom_call.1} parent=11 // pred_check_branch
          %127 = sbr.rel (%p125) target = $region16
        $region15: #{tpu_custom_call.1} parent=11 // pred_region
          %s129 = ssub.s32 6144, 6144
          %130 = vsyncadd [#allocation7], %s129
          %s131 = sshll.u32 [#allocation6], 4
          %s132 = int_to_ptr.vmem [resolvable:$true] %s131
          %137 = dma.hbm_to_vmem [thread:$0]  %s1, 6144, %s132, [#allocation7], 128, 128, 8
        $region16: #{tpu_custom_call.1} parent=11 // pred_fallthru
          _
        // Predicated region
        $region17: #{tpu_custom_call.1} parent=11 // pred_check
          %p138 = pneg %p84
        $region18: #{tpu_custom_call.1} parent=11 // pred_check_branch
          %140 = sbr.rel (%p138) target = $region20
        $region19: #{tpu_custom_call.1} parent=11 // pred_region
          _
        $region20: #{tpu_custom_call.1} parent=11 // pred_fallthru
          _
      $region12: #{tpu_custom_call.1} parent=5 // pred_fallthru
        _
      %p141 = scmp.lt.s32.totalorder %s16, 2
      // Predicated region
      $region21: #{tpu_custom_call.1} parent=5 // pred_check
        %p142 = pneg %p141
      $region22: #{tpu_custom_call.1} parent=5 // pred_check_branch
        %144 = sbr.rel (%p142) target = $region24
      $region23: #{tpu_custom_call.1} parent=5 // pred_region
        // Predicated region
        $region25: #{tpu_custom_call.1} parent=23 // pred_check
          %p145 = pneg %p36
        $region26: #{tpu_custom_call.1} parent=23 // pred_check_branch
          %147 = sbr.rel (%p145) target = $region28
        $region27: #{tpu_custom_call.1} parent=23 // pred_region
          %s148 = sand.u32 %s26, 1
          %s149 = scalar_lea.sflag [#allocation4], %s148
          %s150 = sand.u32 %s26, 1
          %s151 = smul.addr %s150, 16
          %s152 = scalar_lea.vmem [#allocation3], %s151
          %s154 = ssub.s32 256, 256
          %155 = vsyncadd %s149, %s154
          %s156 = smul.addr %s16, 2
          %s157 = smul.addr %s156, 128
          %s158 = scalar_lea.hbm %s0, %s157
          %s159 = sshll.u32 %s152, 4
          %s160 = int_to_ptr.vmem [resolvable:$true] %s159
          %165 = dma.hbm_to_vmem [thread:$0]  %s158, 256, %s160, %s149, 128, 128, 8
        $region28: #{tpu_custom_call.1} parent=23 // pred_fallthru
          _
      $region24: #{tpu_custom_call.1} parent=5 // pred_fallthru
        _
      %p166 = scmp.le.s32.totalorder 1, %s16
      %p167 = scmp.lt.s32.totalorder %s16, 3
      %p168 = pnand %p166, %p167
      %p169 = pneg %p168
      // Predicated region
      $region29: #{tpu_custom_call.1} parent=5 // pred_check
        _
      $region30: #{tpu_custom_call.1} parent=5 // pred_check_branch
        %171 = sbr.rel (%p168) target = $region32
      $region31: #{tpu_custom_call.1} parent=5 // pred_region
        %s172 = ssub.s32 %s16, 1
        %s173 = sand.u32 %s29, 1
        %s174 = scalar_lea.sflag [#allocation4], %s173
        %s175 = sand.u32 %s29, 1
        %s176 = smul.addr %s175, 16
        %s177 = scalar_lea.vmem [#allocation3], %s176
        // Predicated region
        $region33: #{tpu_custom_call.1} parent=31 // pred_check
          %p178 = pneg %p42
        $region34: #{tpu_custom_call.1} parent=31 // pred_check_branch
          %180 = sbr.rel (%p178) target = $region36
        $region35: #{tpu_custom_call.1} parent=31 // pred_region
          %181 = dma.done %s174, 256
        $region36: #{tpu_custom_call.1} parent=31 // pred_fallthru
          _
        // Predicated region
        $region37: #{tpu_custom_call.1} parent=31 // pred_check
          %p182 = pneg %p63
        $region38: #{tpu_custom_call.1} parent=31 // pred_check_branch
          %184 = sbr.rel (%p182) target = $region40
        $region39: #{tpu_custom_call.1} parent=31 // pred_region
          %185 = dma.done [#allocation7], 6144
        $region40: #{tpu_custom_call.1} parent=31 // pred_fallthru
          _
        %s186 = sand.u32 %s29, 1
        %s187 = scalar_lea.sflag [#allocation4], %s186
        %s188 = sand.u32 %s29, 1
        %s189 = smul.addr %s188, 16
        %s190 = scalar_lea.vmem [#allocation3], %s189
        %p191 = pneg %p42
        %p192 = pneg %p39
        %p193 = pneg %p63
        %p194 = pneg %p60
        %p195 = pneg %p84
        %p196 = pneg %p81
        %p197 = pneg %p110
        %p198 = pneg %p107
        %s199 = sand.u32 %s97, 1
        %s200 = scalar_lea.sflag [#allocation5], %s199
        %s201 = sand.u32 %s97, 1
        %s202 = smul.addr %s201, 16
        %s203 = scalar_lea.vmem [#allocation8], %s202
        %204 = vst [vmem:[#allocation2] sm:$0xff] 0.0
        %205 = vst [vmem:[#allocation2 + $0x8] sm:$0xff] 0.0
        %206 = vst [vmem:[#allocation2 + $0x10] sm:$0x3] 0.0
        %v207 = vld [vmem:[%s177] sm:$0xff]
        %v208 = vld [vmem:[%s177 + $0x8] sm:$0xff]
        %vm209 = vcmask 523264
        %210 = vst.msk [vmem:[#allocation2 + $0x1] sm:$0xff] %vm209, %v207
        %211 = vst.msk [vmem:[#allocation2 + $0x9] sm:$0xff] %vm209, %v208
        %v212 = vld [vmem:[#allocation2] sm:$0xff]
        %v213 = vld [vmem:[#allocation2 + $0x8] sm:$0xff]
        %v214 = vld [vmem:[#allocation6] sm:$0xff]
        %v215 = vld [vmem:[#allocation6 + $0x8] sm:$0xff]
        %v216 = vld [vmem:[#allocation6 + $0x10] sm:$0xff]
        %v217 = vld [vmem:[#allocation6 + $0x18] sm:$0xff]
        %v218 = vld [vmem:[#allocation6 + $0x20] sm:$0xff]
        %v219 = vld [vmem:[#allocation6 + $0x28] sm:$0xff]
        %v220 = vld [vmem:[#allocation6 + $0x30] sm:$0xff]
        %v221 = vld [vmem:[#allocation6 + $0x38] sm:$0xff]
        %v222 = vld [vmem:[#allocation6 + $0x40] sm:$0xff]
        %v223 = vld [vmem:[#allocation6 + $0x48] sm:$0xff]
        %v224 = vld [vmem:[#allocation6 + $0x50] sm:$0xff]
        %v225 = vld [vmem:[#allocation6 + $0x58] sm:$0xff]
        %v226 = vld [vmem:[#allocation6 + $0x60] sm:$0xff]
        %v227 = vld [vmem:[#allocation6 + $0x68] sm:$0xff]
        %v228 = vld [vmem:[#allocation6 + $0x70] sm:$0xff]
        %v229 = vld [vmem:[#allocation6 + $0x78] sm:$0xff]
        %v230 = vld [vmem:[#allocation2 + $0x1] sm:$0xff]
        %v231 = vld [vmem:[#allocation2 + $0x9] sm:$0xff]
        %s232 = scalar_lea.vmem [#allocation6], 128
        %v233 = vld [vmem:[%s232] sm:$0xff]
        %v234 = vld [vmem:[%s232 + $0x8] sm:$0xff]
        %v235 = vld [vmem:[%s232 + $0x10] sm:$0xff]
        %v236 = vld [vmem:[%s232 + $0x18] sm:$0xff]
        %v237 = vld [vmem:[%s232 + $0x20] sm:$0xff]
        %v238 = vld [vmem:[%s232 + $0x28] sm:$0xff]
        %v239 = vld [vmem:[%s232 + $0x30] sm:$0xff]
        %v240 = vld [vmem:[%s232 + $0x38] sm:$0xff]
        %v241 = vld [vmem:[%s232 + $0x40] sm:$0xff]
        %v242 = vld [vmem:[%s232 + $0x48] sm:$0xff]
        %v243 = vld [vmem:[%s232 + $0x50] sm:$0xff]
        %v244 = vld [vmem:[%s232 + $0x58] sm:$0xff]
        %v245 = vld [vmem:[%s232 + $0x60] sm:$0xff]
        %v246 = vld [vmem:[%s232 + $0x68] sm:$0xff]
        %v247 = vld [vmem:[%s232 + $0x70] sm:$0xff]
        %v248 = vld [vmem:[%s232 + $0x78] sm:$0xff]
        %249 = vmatprep.subr.mxu0 0.0
        %250 = vmatpush1.msra.mxu0 %v233
        %251 = vmatprep.subr.mxu0 0.0
        %252 = vmatpush1.msra.mxu0 %v234
        %253 = vmatprep.subr.mxu0 0.0
        %254 = vmatpush1.msra.mxu0 %v235
        %255 = vmatprep.subr.mxu0 0.0
        %256 = vmatpush1.msra.mxu0 %v236
        %257 = vmatprep.subr.mxu0 0.0
        %258 = vmatpush1.msra.mxu0 %v237
        %259 = vmatprep.subr.mxu0 0.0
        %260 = vmatpush1.msra.mxu0 %v238
        %261 = vmatprep.subr.mxu0 0.0
        %262 = vmatpush1.msra.mxu0 %v239
        %263 = vmatprep.subr.mxu0 0.0
        %264 = vmatpush1.msra.mxu0 %v240
        %265 = vmatprep.subr.mxu0 0.0
        %266 = vmatpush1.msra.mxu0 %v241
        %267 = vmatprep.subr.mxu0 0.0
        %268 = vmatpush1.msra.mxu0 %v242
        %269 = vmatprep.subr.mxu0 0.0
        %270 = vmatpush1.msra.mxu0 %v243
        %271 = vmatprep.subr.mxu0 0.0
        %272 = vmatpush1.msra.mxu0 %v244
        %273 = vmatprep.subr.mxu0 0.0
        %274 = vmatpush1.msra.mxu0 %v245
        %275 = vmatprep.subr.mxu0 0.0
        %276 = vmatpush1.msra.mxu0 %v246
        %277 = vmatprep.subr.mxu0 0.0
        %278 = vmatpush1.msra.mxu0 %v247
        %279 = vmatprep.subr.mxu0 0.0
        %280 = vmatpush1.msra.mxu0 %v248
        %281 = vmatprep.subr.mxu0 0.0
        %282 = vmatpush1.msra.mxu0 0.0
        %283 = vmatprep.subr.mxu0 0.0
        %284 = vmatpush1.msra.mxu0 0.0
        %285 = vmatprep.subr.mxu0 0.0
        %286 = vmatpush1.msra.mxu0 0.0
        %287 = vmatprep.subr.mxu0 0.0
        %288 = vmatpush1.msra.mxu0 0.0
        %289 = vmatprep.subr.mxu0 0.0
        %290 = vmatpush1.msra.mxu0 0.0
        %291 = vmatprep.subr.mxu0 0.0
        %292 = vmatpush1.msra.mxu0 0.0
        %293 = vmatprep.subr.mxu0 0.0
        %294 = vmatpush1.msra.mxu0 0.0
        %295 = vmatprep.subr.mxu0 0.0
        %296 = vmatpush1.msra.mxu0 0.0
        %297 = vmatprep.subr.mxu0 0.0
        %298 = vmatpush1.msra.mxu0 0.0
        %299 = vmatprep.subr.mxu0 0.0
        %300 = vmatpush1.msra.mxu0 0.0
        %301 = vmatprep.subr.mxu0 0.0
        %302 = vmatpush1.msra.mxu0 0.0
        %303 = vmatprep.subr.mxu0 0.0
        %304 = vmatpush1.msra.mxu0 0.0
        %305 = vmatprep.subr.mxu0 0.0
        %306 = vmatpush1.msra.mxu0 0.0
        %307 = vmatprep.subr.mxu0 0.0
        %308 = vmatpush1.msra.mxu0 0.0
        %309 = vmatprep.subr.mxu0 0.0
        %310 = vmatpush1.msra.mxu0 0.0
        %311 = vmatprep.subr.mxu0 0.0
        %312 = vmatpush1.msra.mxu0 0.0
        %313 = vmatprep.mubr.f32.mxu0 0.0
        %314 = vmatmul.mubr.f32.gmra.mrb[0].mxu0 %v230
        %v315 = vpop.f32.mrb[0].mxu0
        %v316 = vadd.f32 0.0, %v315
        %v317 = vpop.f32.mrb[0].mxu0
        %318 = vmatprep.mubr.f32.mxu0 0.0
        %319 = vmatmul.mubr.f32.gmra.mrb[0].mxu0 %v231
        %v320 = vpop.f32.mrb[0].mxu0
        %v321 = vadd.f32 0.0, %v320
        %v322 = vpop.f32.mrb[0].mxu0
        %323 = vdwg.mxu0
        %324 = vmatprep.subr.mxu0 0.0
        %325 = vmatpush1.msra.mxu0 %v214
        %326 = vmatprep.subr.mxu0 0.0
        %327 = vmatpush1.msra.mxu0 %v215
        %328 = vmatprep.subr.mxu0 0.0
        %329 = vmatpush1.msra.mxu0 %v216
        %330 = vmatprep.subr.mxu0 0.0
        %331 = vmatpush1.msra.mxu0 %v217
        %332 = vmatprep.subr.mxu0 0.0
        %333 = vmatpush1.msra.mxu0 %v218
        %334 = vmatprep.subr.mxu0 0.0
        %335 = vmatpush1.msra.mxu0 %v219
        %336 = vmatprep.subr.mxu0 0.0
        %337 = vmatpush1.msra.mxu0 %v220
        %338 = vmatprep.subr.mxu0 0.0
        %339 = vmatpush1.msra.mxu0 %v221
        %340 = vmatprep.subr.mxu0 0.0
        %341 = vmatpush1.msra.mxu0 %v222
        %342 = vmatprep.subr.mxu0 0.0
        %343 = vmatpush1.msra.mxu0 %v223
        %344 = vmatprep.subr.mxu0 0.0
        %345 = vmatpush1.msra.mxu0 %v224
        %346 = vmatprep.subr.mxu0 0.0
        %347 = vmatpush1.msra.mxu0 %v225
        %348 = vmatprep.subr.mxu0 0.0
        %349 = vmatpush1.msra.mxu0 %v226
        %350 = vmatprep.subr.mxu0 0.0
        %351 = vmatpush1.msra.mxu0 %v227
        %352 = vmatprep.subr.mxu0 0.0
        %353 = vmatpush1.msra.mxu0 %v228
        %354 = vmatprep.subr.mxu0 0.0
        %355 = vmatpush1.msra.mxu0 %v229
        %356 = vmatprep.subr.mxu0 0.0
        %357 = vmatpush1.msra.mxu0 0.0
        %358 = vmatprep.subr.mxu0 0.0
        %359 = vmatpush1.msra.mxu0 0.0
        %360 = vmatprep.subr.mxu0 0.0
        %361 = vmatpush1.msra.mxu0 0.0
        %362 = vmatprep.subr.mxu0 0.0
        %363 = vmatpush1.msra.mxu0 0.0
        %364 = vmatprep.subr.mxu0 0.0
        %365 = vmatpush1.msra.mxu0 0.0
        %366 = vmatprep.subr.mxu0 0.0
        %367 = vmatpush1.msra.mxu0 0.0
        %368 = vmatprep.subr.mxu0 0.0
        %369 = vmatpush1.msra.mxu0 0.0
        %370 = vmatprep.subr.mxu0 0.0
        %371 = vmatpush1.msra.mxu0 0.0
        %372 = vmatprep.subr.mxu0 0.0
        %373 = vmatpush1.msra.mxu0 0.0
        %374 = vmatprep.subr.mxu0 0.0
        %375 = vmatpush1.msra.mxu0 0.0
        %376 = vmatprep.subr.mxu0 0.0
        %377 = vmatpush1.msra.mxu0 0.0
        %378 = vmatprep.subr.mxu0 0.0
        %379 = vmatpush1.msra.mxu0 0.0
        %380 = vmatprep.subr.mxu0 0.0
        %381 = vmatpush1.msra.mxu0 0.0
        %382 = vmatprep.subr.mxu0 0.0
        %383 = vmatpush1.msra.mxu0 0.0
        %384 = vmatprep.subr.mxu0 0.0
        %385 = vmatpush1.msra.mxu0 0.0
        %386 = vmatprep.subr.mxu0 0.0
        %387 = vmatpush1.msra.mxu0 0.0
        %388 = vmatprep.mubr.f32.mxu0 0.0
        %389 = vmatmul.mubr.f32.gmra.mrb[0].mxu0 %v212
        %v390 = vpop.f32.mrb[0].mxu0
        %v391 = vadd.f32 %v316, %v390
        %v392 = vpop.f32.mrb[0].mxu0
        %393 = vmatprep.mubr.f32.mxu0 0.0
        %394 = vmatmul.mubr.f32.gmra.mrb[0].mxu0 %v213
        %v395 = vpop.f32.mrb[0].mxu0
        %v396 = vadd.f32 %v321, %v395
        %v397 = vpop.f32.mrb[0].mxu0
        %398 = vdwg.mxu0
        %v399 = vld [vmem:[#allocation2 + $0x2] sm:$0xff]
        %v400 = vld [vmem:[#allocation2 + $0xa] sm:$0xff]
        %s401 = scalar_lea.vmem [#allocation6], 256
        %v402 = vld [vmem:[%s401] sm:$0xff]
        %v403 = vld [vmem:[%s401 + $0x8] sm:$0xff]
        %v404 = vld [vmem:[%s401 + $0x10] sm:$0xff]
        %v405 = vld [vmem:[%s401 + $0x18] sm:$0xff]
        %v406 = vld [vmem:[%s401 + $0x20] sm:$0xff]
        %v407 = vld [vmem:[%s401 + $0x28] sm:$0xff]
        %v408 = vld [vmem:[%s401 + $0x30] sm:$0xff]
        %v409 = vld [vmem:[%s401 + $0x38] sm:$0xff]
        %v410 = vld [vmem:[%s401 + $0x40] sm:$0xff]
        %v411 = vld [vmem:[%s401 + $0x48] sm:$0xff]
        %v412 = vld [vmem:[%s401 + $0x50] sm:$0xff]
        %v413 = vld [vmem:[%s401 + $0x58] sm:$0xff]
        %v414 = vld [vmem:[%s401 + $0x60] sm:$0xff]
        %v415 = vld [vmem:[%s401 + $0x68] sm:$0xff]
        %v416 = vld [vmem:[%s401 + $0x70] sm:$0xff]
        %v417 = vld [vmem:[%s401 + $0x78] sm:$0xff]
        %418 = vmatprep.subr.mxu0 0.0
        %419 = vmatpush1.msra.mxu0 %v402
        %420 = vmatprep.subr.mxu0 0.0
        %421 = vmatpush1.msra.mxu0 %v403
        %422 = vmatprep.subr.mxu0 0.0
        %423 = vmatpush1.msra.mxu0 %v404
        %424 = vmatprep.subr.mxu0 0.0
        %425 = vmatpush1.msra.mxu0 %v405
        %426 = vmatprep.subr.mxu0 0.0
        %427 = vmatpush1.msra.mxu0 %v406
        %428 = vmatprep.subr.mxu0 0.0
        %429 = vmatpush1.msra.mxu0 %v407
        %430 = vmatprep.subr.mxu0 0.0
        %431 = vmatpush1.msra.mxu0 %v408
        %432 = vmatprep.subr.mxu0 0.0
        %433 = vmatpush1.msra.mxu0 %v409
        %434 = vmatprep.subr.mxu0 0.0
        %435 = vmatpush1.msra.mxu0 %v410
        %436 = vmatprep.subr.mxu0 0.0
        %437 = vmatpush1.msra.mxu0 %v411
        %438 = vmatprep.subr.mxu0 0.0
        %439 = vmatpush1.msra.mxu0 %v412
        %440 = vmatprep.subr.mxu0 0.0
        %441 = vmatpush1.msra.mxu0 %v413
        %442 = vmatprep.subr.mxu0 0.0
        %443 = vmatpush1.msra.mxu0 %v414
        %444 = vmatprep.subr.mxu0 0.0
        %445 = vmatpush1.msra.mxu0 %v415
        %446 = vmatprep.subr.mxu0 0.0
        %447 = vmatpush1.msra.mxu0 %v416
        %448 = vmatprep.subr.mxu0 0.0
        %449 = vmatpush1.msra.mxu0 %v417
        %450 = vmatprep.subr.mxu0 0.0
        %451 = vmatpush1.msra.mxu0 0.0
        %452 = vmatprep.subr.mxu0 0.0
        %453 = vmatpush1.msra.mxu0 0.0
        %454 = vmatprep.subr.mxu0 0.0
        %455 = vmatpush1.msra.mxu0 0.0
        %456 = vmatprep.subr.mxu0 0.0
        %457 = vmatpush1.msra.mxu0 0.0
        %458 = vmatprep.subr.mxu0 0.0
        %459 = vmatpush1.msra.mxu0 0.0
        %460 = vmatprep.subr.mxu0 0.0
        %461 = vmatpush1.msra.mxu0 0.0
        %462 = vmatprep.subr.mxu0 0.0
        %463 = vmatpush1.msra.mxu0 0.0
        %464 = vmatprep.subr.mxu0 0.0
        %465 = vmatpush1.msra.mxu0 0.0
        %466 = vmatprep.subr.mxu0 0.0
        %467 = vmatpush1.msra.mxu0 0.0
        %468 = vmatprep.subr.mxu0 0.0
        %469 = vmatpush1.msra.mxu0 0.0
        %470 = vmatprep.subr.mxu0 0.0
        %471 = vmatpush1.msra.mxu0 0.0
        %472 = vmatprep.subr.mxu0 0.0
        %473 = vmatpush1.msra.mxu0 0.0
        %474 = vmatprep.subr.mxu0 0.0
        %475 = vmatpush1.msra.mxu0 0.0
        %476 = vmatprep.subr.mxu0 0.0
        %477 = vmatpush1.msra.mxu0 0.0
        %478 = vmatprep.subr.mxu0 0.0
        %479 = vmatpush1.msra.mxu0 0.0
        %480 = vmatprep.subr.mxu0 0.0
        %481 = vmatpush1.msra.mxu0 0.0
        %482 = vmatprep.mubr.f32.mxu0 0.0
        %483 = vmatmul.mubr.f32.gmra.mrb[0].mxu0 %v399
        %v484 = vpop.f32.mrb[0].mxu0
        %v485 = vadd.f32 0.0, %v484
        %v486 = vpop.f32.mrb[0].mxu0
        %487 = vmatprep.mubr.f32.mxu0 0.0
        %488 = vmatmul.mubr.f32.gmra.mrb[0].mxu0 %v400
        %v489 = vpop.f32.mrb[0].mxu0
        %v490 = vadd.f32 0.0, %v489
        %v491 = vpop.f32.mrb[0].mxu0
        %492 = vdwg.mxu0
        %v493 = vadd.f32 %v391, %v485
        %v494 = vadd.f32 %v396, %v490
        %v495 = vld [vmem:[%s2] sm:$0x1]
        %v497 = vlaneseq
        %v498 = vshrl.u32 %v497, 7
        %v499 = vsub.s32 0, %v498
        %v500 = vrot.slane %v495, %v499
        %v502 = vadd.f32 %v493, %v500
        %v503 = vadd.f32 %v494, %v500
        %v504 = vmul.f32 %v502, 0.2
        %v505 = vmul.f32 %v503, 0.2
        %v506 = vmax.f32 %v502, %v504
        %v507 = vmax.f32 %v503, %v505
        %508 = vst [vmem:[%s203] sm:$0xff] %v506
        %509 = vst [vmem:[%s203 + $0x8] sm:$0xff] %v507
        %s510 = sand.u32 %s97, 1
        %s511 = scalar_lea.sflag [#allocation5], %s510
        %s512 = sand.u32 %s97, 1
        %s513 = smul.addr %s512, 16
        %s514 = scalar_lea.vmem [#allocation8], %s513
        // Predicated region
        $region41: #{tpu_custom_call.1} parent=31 // pred_check
          %p515 = pneg %p107
        $region42: #{tpu_custom_call.1} parent=31 // pred_check_branch
          %517 = sbr.rel (%p515) target = $region44
        $region43: #{tpu_custom_call.1} parent=31 // pred_region
          %s519 = ssub.s32 256, 256
          %520 = vsyncadd %s511, %s519
          %s521 = smul.addr %s21, 2
          %s522 = smul.addr %s521, 128
          %s523 = scalar_lea.hbm %s3, %s522
          %s524 = sshll.u32 %s514, 4
          %s525 = int_to_ptr.vmem [resolvable:$true] %s524
          %530 = dma.vmem_to_hbm [thread:$0]  %s525, 256, %s523, %s511, 128, 128, 8
        $region44: #{tpu_custom_call.1} parent=31 // pred_fallthru
          _
      $region32: #{tpu_custom_call.1} parent=5 // pred_fallthru
        _
      %p531 = scmp.le.s32.totalorder 2, %s16
      // Predicated region
      $region45: #{tpu_custom_call.1} parent=5 // pred_check
        %p532 = pneg %p531
      $region46: #{tpu_custom_call.1} parent=5 // pred_check_branch
        %534 = sbr.rel (%p532) target = $region48
      $region47: #{tpu_custom_call.1} parent=5 // pred_region
        %s535 = ssub.s32 %s16, 2
        // Predicated region
        $region49: #{tpu_custom_call.1} parent=47 // pred_check
          %p536 = pneg %p113
        $region50: #{tpu_custom_call.1} parent=47 // pred_check_branch
          %538 = sbr.rel (%p536) target = $region52
        $region51: #{tpu_custom_call.1} parent=47 // pred_region
          %s539 = sand.u32 %s98, 1
          %s540 = scalar_lea.sflag [#allocation5], %s539
          %s541 = sand.u32 %s98, 1
          %s542 = smul.addr %s541, 16
          %s543 = scalar_lea.vmem [#allocation8], %s542
          %544 = dma.done %s540, 256
        $region52: #{tpu_custom_call.1} parent=47 // pred_fallthru
          _
      $region48: #{tpu_custom_call.1} parent=5 // pred_fallthru
        _
    $region6: #{tpu_custom_call.1} parent=1 // loop_footer
      %s20 = sadd.s32 1, %s16
    $region7: #{tpu_custom_call.1} parent=1 // loop_footer_branch
      %15 = sbr.rel target = $region3
    $region8: #{tpu_custom_call.1} parent=1 // loop_exit
      _
    %545 = vsyncpa [#allocation4], 1
    %s546 = scalar_lea.sflag [#allocation4], 1
    %547 = vsyncpa %s546, 1
    %548 = vsyncpa [#allocation7], 1
    %549 = vsyncpa [#allocation5], 1
    %s550 = scalar_lea.sflag [#allocation5], 1
    %551 = vsyncpa %s550, 1

</llo_original>
